<compile_context>
chip_gen: v7x
topology: tpu7x:2x2x1
jax: 0.10.0
libtpu: 0.0.40
codegen_flags: <defaults>
</compile_context>

<pallas_src>
import functools
import math

import jax
import jax.numpy as jnp
from jax import lax
from jax.experimental import pallas as pl
from jax.experimental.pallas import tpu as pltpu


def _hash_u32(v):
    """Murmur3-style finalizer: decorrelates consecutive uint32 counters."""
    v = v ^ (v >> 16)
    v = v * jnp.uint32(0x85EBCA6B)
    v = v ^ (v >> 13)
    v = v * jnp.uint32(0xC2B2AE35)
    v = v ^ (v >> 16)
    return v


def _bits_to_uniform(bits):
    """uint32 bits -> f32 uniform in [0, 1) via the exponent bit-trick."""
    mant = (bits >> 9) | jnp.uint32(0x3F800000)      # float in [1, 2)
    return lax.bitcast_convert_type(mant, jnp.float32) - jnp.float32(1.0)


def _diffusion_kernel(x_ref, o_ref, *, beta, s1, s2, block_rows, lanes):
    i = pl.program_id(0)
    half = block_rows // 2

    # Globally-unique per-pair counters (unique across grid steps and cores),
    # so tiling + "parallel" grid semantics stay statistically correct.
    row = lax.broadcasted_iota(jnp.int32, (half, lanes), 0)
    col = lax.broadcasted_iota(jnp.int32, (half, lanes), 1)
    idx = ((i * block_rows + row) * lanes + col).astype(jnp.uint32)

    # Two independent uniform streams (seed folded in as static constants).
    u1 = _bits_to_uniform(_hash_u32(idx ^ jnp.uint32(s1)))
    u2 = _bits_to_uniform(_hash_u32(idx ^ jnp.uint32(s2)))
    u1 = jnp.float32(1.0) - u1                        # (0, 1]: safe for log

    # Box-Muller using BOTH outputs: one sqrt/log per two normal samples.
    r = jnp.sqrt(jnp.float32(-2.0) * jnp.log(u1))
    theta = jnp.float32(2.0 * math.pi) * u2
    z = jnp.concatenate([r * jnp.cos(theta), r * jnp.sin(theta)], axis=0)

    # x + beta * N(0, 1): HBM traffic stays in the native dtype, math in f32.
    xv = x_ref[...].astype(jnp.float32)
    o_ref[...] = (xv + z * jnp.float32(beta)).astype(o_ref.dtype)


def diffusion_operator(x, beta, seed=0):
    """JAX/Pallas equivalent of DiffusionOperator.forward: x + randn_like(x)*beta."""
    orig_shape = x.shape
    dtype = x.dtype
    total = x.size

    LANES = 512                         # lane-dense slab -> full-width stores
    rows = max(8, ((pl.cdiv(total, LANES) + 7) // 8) * 8)
    pad = rows * LANES - total

    flat = x.reshape(-1)
    if pad:
        flat = jnp.pad(flat, (0, pad))
    x2d = flat.reshape(rows, LANES)

    # ~1 MiB f32 data per block: leaves room for Box-Muller temporaries and
    # double buffering inside v7x's 64 MiB VMEM; amortizes per-step overhead.
    block_rows = min(rows, 512)
    while rows % block_rows != 0:       # rows and block_rows are multiples of 8
        block_rows -= 8

    # Static per-seed stream constants (two independent hash streams).
    s1 = (int(seed) * 0x9E3779B1 + 0x85EBCA77) & 0xFFFFFFFF
    s2 = (int(seed) * 0xC2B2AE3D + 0x27D4EB2F) & 0xFFFFFFFF

    kernel = functools.partial(
        _diffusion_kernel, beta=float(beta), s1=s1, s2=s2,
        block_rows=block_rows, lanes=LANES)

    out2d = pl.pallas_call(
        kernel,
        out_shape=jax.ShapeDtypeStruct((rows, LANES), dtype),
        grid=(rows // block_rows,),
        in_specs=[pl.BlockSpec((block_rows, LANES), lambda i: (i, 0))],
        out_specs=pl.BlockSpec((block_rows, LANES), lambda i: (i, 0)),
        compiler_params=pltpu.CompilerParams(
            dimension_semantics=("parallel",)),
    )(x2d)

    return out2d.reshape(-1)[:total].reshape(orig_shape)


if __name__ == "__main__":
    key = jax.random.PRNGKey(0)
    # Small NCHW input consistent with a diffusion-style operator.
    x = jax.random.normal(key, (2, 4, 16, 16), dtype=jnp.float32)
    beta = 0.1

    out = diffusion_operator(x, beta, seed=0)
    out = jax.block_until_ready(out)

    # Sanity checks: shape/dtype preserved, noise magnitude ~ beta.
    assert out.shape == x.shape and out.dtype == x.dtype
    noise = out - x
    assert bool(jnp.all(jnp.isfinite(noise)))
    std = float(jnp.std(noise))
    assert 0.3 * beta < std < 3.0 * beta, f"noise std {std} not O(beta)"

    print("KERNEL_OK")
</pallas_src>

<mosaic_0001>
module attributes {stable_mosaic.version = 11 : i64} {
  func.func @_diffusion_kernel(%arg0: i32, %arg1: memref<8x512xf32, #tpu.memory_space<vmem>>, %arg2: memref<8x512xf32, #tpu.memory_space<vmem>>) attributes {dimension_semantics = [#tpu.dimension_semantics<parallel>], iteration_bounds = array<i64: 1>, scalar_prefetch = 0 : i64, scratch_operands = 0 : i64, tpu.core_type = #tpu.core_type<tc>, window_params = [{transform_indices = @transform_0, window_bounds = array<i64: 8, 512>}, {transform_indices = @transform_1, window_bounds = array<i64: 8, 512>}]} {
    %0 = tpu.iota {dimensions = array<i32: 0>} : vector<4x512xi32>
    %1 = tpu.iota {dimensions = array<i32: 1>} : vector<4x512xi32>
    %c8_i32 = arith.constant 8 : i32
    %2 = arith.muli %arg0, %c8_i32 : i32
    %3 = vector.broadcast %2 : i32 to vector<4x512xi32>
    %4 = arith.addi %3, %0 : vector<4x512xi32>
    %c512_i32 = arith.constant 512 : i32
    %5 = vector.broadcast %c512_i32 : i32 to vector<4x512xi32>
    %6 = arith.muli %4, %5 : vector<4x512xi32>
    %7 = arith.addi %6, %1 : vector<4x512xi32>
    %c-2048144777_i32 = arith.constant -2048144777 : i32
    %8 = vector.broadcast %c-2048144777_i32 : i32 to vector<4x512xi32>
    %9 = arith.xori %7, %8 : vector<4x512xi32>
    %c16_i32 = arith.constant 16 : i32
    %10 = vector.broadcast %c16_i32 : i32 to vector<4x512xi32>
    %11 = arith.shrui %9, %10 : vector<4x512xi32>
    %12 = arith.xori %9, %11 : vector<4x512xi32>
    %c-2048144789_i32 = arith.constant -2048144789 : i32
    %13 = vector.broadcast %c-2048144789_i32 : i32 to vector<4x512xi32>
    %14 = arith.muli %12, %13 : vector<4x512xi32>
    %c13_i32 = arith.constant 13 : i32
    %15 = vector.broadcast %c13_i32 : i32 to vector<4x512xi32>
    %16 = arith.shrui %14, %15 : vector<4x512xi32>
    %17 = arith.xori %14, %16 : vector<4x512xi32>
    %c-1028477387_i32 = arith.constant -1028477387 : i32
    %18 = vector.broadcast %c-1028477387_i32 : i32 to vector<4x512xi32>
    %19 = arith.muli %17, %18 : vector<4x512xi32>
    %c16_i32_0 = arith.constant 16 : i32
    %20 = vector.broadcast %c16_i32_0 : i32 to vector<4x512xi32>
    %21 = arith.shrui %19, %20 : vector<4x512xi32>
    %22 = arith.xori %19, %21 : vector<4x512xi32>
    %c9_i32 = arith.constant 9 : i32
    %23 = vector.broadcast %c9_i32 : i32 to vector<4x512xi32>
    %24 = arith.shrui %22, %23 : vector<4x512xi32>
    %c1065353216_i32 = arith.constant 1065353216 : i32
    %25 = vector.broadcast %c1065353216_i32 : i32 to vector<4x512xi32>
    %26 = arith.ori %24, %25 : vector<4x512xi32>
    %27 = tpu.bitcast %26 : vector<4x512xi32> -> vector<4x512xf32>
    %cst = arith.constant 1.000000e+00 : f32
    %28 = vector.broadcast %cst : f32 to vector<4x512xf32>
    %29 = arith.subf %27, %28 : vector<4x512xf32>
    %c668265263_i32 = arith.constant 668265263 : i32
    %30 = vector.broadcast %c668265263_i32 : i32 to vector<4x512xi32>
    %31 = arith.xori %7, %30 : vector<4x512xi32>
    %c16_i32_1 = arith.constant 16 : i32
    %32 = vector.broadcast %c16_i32_1 : i32 to vector<4x512xi32>
    %33 = arith.shrui %31, %32 : vector<4x512xi32>
    %34 = arith.xori %31, %33 : vector<4x512xi32>
    %c-2048144789_i32_2 = arith.constant -2048144789 : i32
    %35 = vector.broadcast %c-2048144789_i32_2 : i32 to vector<4x512xi32>
    %36 = arith.muli %34, %35 : vector<4x512xi32>
    %c13_i32_3 = arith.constant 13 : i32
    %37 = vector.broadcast %c13_i32_3 : i32 to vector<4x512xi32>
    %38 = arith.shrui %36, %37 : vector<4x512xi32>
    %39 = arith.xori %36, %38 : vector<4x512xi32>
    %c-1028477387_i32_4 = arith.constant -1028477387 : i32
    %40 = vector.broadcast %c-1028477387_i32_4 : i32 to vector<4x512xi32>
    %41 = arith.muli %39, %40 : vector<4x512xi32>
    %c16_i32_5 = arith.constant 16 : i32
    %42 = vector.broadcast %c16_i32_5 : i32 to vector<4x512xi32>
    %43 = arith.shrui %41, %42 : vector<4x512xi32>
    %44 = arith.xori %41, %43 : vector<4x512xi32>
    %c9_i32_6 = arith.constant 9 : i32
    %45 = vector.broadcast %c9_i32_6 : i32 to vector<4x512xi32>
    %46 = arith.shrui %44, %45 : vector<4x512xi32>
    %c1065353216_i32_7 = arith.constant 1065353216 : i32
    %47 = vector.broadcast %c1065353216_i32_7 : i32 to vector<4x512xi32>
    %48 = arith.ori %46, %47 : vector<4x512xi32>
    %49 = tpu.bitcast %48 : vector<4x512xi32> -> vector<4x512xf32>
    %cst_8 = arith.constant 1.000000e+00 : f32
    %50 = vector.broadcast %cst_8 : f32 to vector<4x512xf32>
    %51 = arith.subf %49, %50 : vector<4x512xf32>
    %cst_9 = arith.constant 1.000000e+00 : f32
    %52 = vector.broadcast %cst_9 : f32 to vector<4x512xf32>
    %53 = arith.subf %52, %29 : vector<4x512xf32>
    %54 = math.log %53 : vector<4x512xf32>
    %cst_10 = arith.constant -2.000000e+00 : f32
    %55 = vector.broadcast %cst_10 : f32 to vector<4x512xf32>
    %56 = arith.mulf %55, %54 : vector<4x512xf32>
    %57 = math.sqrt %56 : vector<4x512xf32>
    %cst_11 = arith.constant 6.28318548 : f32
    %58 = vector.broadcast %cst_11 : f32 to vector<4x512xf32>
    %59 = arith.mulf %58, %51 : vector<4x512xf32>
    %60 = math.cos %59 : vector<4x512xf32>
    %61 = arith.mulf %57, %60 : vector<4x512xf32>
    %62 = math.sin %59 : vector<4x512xf32>
    %63 = arith.mulf %57, %62 : vector<4x512xf32>
    %64 = tpu.concatenate %61, %63 in 0 : vector<4x512xf32>, vector<4x512xf32> -> vector<8x512xf32>
    %c0 = arith.constant 0 : index
    %c0_12 = arith.constant 0 : index
    %65 = vector.load %arg1[%c0, %c0_12] : memref<8x512xf32, #tpu.memory_space<vmem>>, vector<8x512xf32>
    %cst_13 = arith.constant 1.000000e-01 : f32
    %66 = vector.broadcast %cst_13 : f32 to vector<8x512xf32>
    %67 = arith.mulf %64, %66 : vector<8x512xf32>
    %68 = arith.addf %65, %67 : vector<8x512xf32>
    %c0_14 = arith.constant 0 : index
    %c0_15 = arith.constant 0 : index
    %69 = vector.load %arg2[%c0_14, %c0_15] : memref<8x512xf32, #tpu.memory_space<vmem>>, vector<8x512xf32>
    tpu.vector_store %arg2[%c0_14, %c0_15], %68 {strides = array<i32>} : memref<8x512xf32, #tpu.memory_space<vmem>>, vector<8x512xf32>,
    return
  }
  func.func @transform_0(%arg0: i32) -> (i32, i32) {
    %c0_i32 = arith.constant 0 : i32
    %c0_i32_0 = arith.constant 0 : i32
    return %arg0, %c0_i32 : i32, i32
  }
  func.func @transform_1(%arg0: i32) -> (i32, i32) {
    %c0_i32 = arith.constant 0 : i32
    %c0_i32_0 = arith.constant 0 : i32
    return %arg0, %c0_i32 : i32, i32
  }
}

</mosaic_0001>

<llo_original>
// kernel: tpu_custom_call.1
$region0: #{tpu_custom_call.1}
  #allocation0 [shape = 'u32[]', space=smem, size = 0x4, offset = 0x4, fixed_abs, tag = 'smem constant byte address 0x4 - core index']
  #allocation1 [shape = 'u32[144,128]{1,0:T(1,128)}', space=vmem, size = 0x12000, scoped, tag = 'internal scratch']
  %s0 = inlined_call_operand.hbm [shape: f32[8,512], index: 0, kind: input, shape index: {}]
  %s1 = inlined_call_operand.hbm [shape: f32[8,512], index: 1, kind: output, shape index: {}]
  %s2 = sld [smem:[#allocation0]]
  $region18: #{tpu_custom_call.1} parent=0
    _
  %s4 = ssub.s32 1, %s2
  %s5 = scalar_select 0, %s4, %s2
  $region1: #{tpu_custom_call.1} parent=0
    #allocation2 [shape = 'u8[16384]{0}', space=vmem, size = 0x4000, scoped, tag = 'input window, operand 0, single buffered']
    #allocation3 [shape = 's32[1]{0}', space=sflag, size = 0x4, scoped, tag = 'scoped memory for tpu_custom_call.1']
    #allocation4 [shape = 's32[1]{0}', space=sflag, size = 0x4, scoped, tag = 'scoped memory for tpu_custom_call.1']
    #allocation5 [shape = 'u8[16384]{0}', space=vmem, size = 0x4000, scoped, tag = 'output window, operand 0, single buffered']
    %6 = vsyncpa [#allocation3], 0
    %7 = vsyncpa [#allocation4], 0
    // Predicated region
    $region2: #{tpu_custom_call.1} parent=1 // pred_check
      _
    $region3: #{tpu_custom_call.1} parent=1 // pred_check_branch
      %9 = sbr.rel (0) target = $region5
    $region4: #{tpu_custom_call.1} parent=1 // pred_region
      %s11 = ssub.s32 512, 512
      %12 = vsyncadd [#allocation3], %s11
      %s14 = sshll.u32 [#allocation2], 4
      %s15 = int_to_ptr.vmem [resolvable:$true] %s14
      %17 = dma.hbm_to_vmem [thread:$0]  %s0, 512, %s15, [#allocation3]
    $region5: #{tpu_custom_call.1} parent=1 // pred_fallthru
      _
    // Predicated region
    $region6: #{tpu_custom_call.1} parent=1 // pred_check
      _
    $region7: #{tpu_custom_call.1} parent=1 // pred_check_branch
      %19 = sbr.rel (0) target = $region9
    $region8: #{tpu_custom_call.1} parent=1 // pred_region
      %20 = dma.done [#allocation3], 512
    $region9: #{tpu_custom_call.1} parent=1 // pred_fallthru
      _
    %v21 = vlaneseq
    %v22 = vshrl.u32 %v21, 7
    %v23 = vlaneseq
    %v24 = vand.u32 %v23, 127
    %v25 = vadd.s32 %v24, 128
    %v26 = vadd.s32 %v24, 256
    %v27 = vadd.s32 %v24, 384
    %s28 = smul.u32 0, 8
    %v29 = vstv %s28
    %v30 = vadd.s32 %v29, %v22
    %v31 = vmul.u32 %v30, 512
    %v32 = vadd.s32 %v31, %v24
    %v33 = vadd.s32 %v31, %v25
    %v34 = vadd.s32 %v31, %v26
    %v35 = vadd.s32 %v31, %v27
    %v36 = vxor.u32 %v32, 2246822519
    %v37 = vxor.u32 %v33, 2246822519
    %v38 = vxor.u32 %v34, 2246822519
    %v39 = vxor.u32 %v35, 2246822519
    %v40 = vshrl.u32 %v36, 16
    %v41 = vshrl.u32 %v37, 16
    %v42 = vshrl.u32 %v38, 16
    %v43 = vshrl.u32 %v39, 16
    %v44 = vxor.u32 %v36, %v40
    %v45 = vxor.u32 %v37, %v41
    %v46 = vxor.u32 %v38, %v42
    %v47 = vxor.u32 %v39, %v43
    %v48 = vmul.u32 %v44, 2246822507
    %v49 = vmul.u32 %v45, 2246822507
    %v50 = vmul.u32 %v46, 2246822507
    %v51 = vmul.u32 %v47, 2246822507
    %v52 = vshrl.u32 %v48, 13
    %v53 = vshrl.u32 %v49, 13
    %v54 = vshrl.u32 %v50, 13
    %v55 = vshrl.u32 %v51, 13
    %v56 = vxor.u32 %v48, %v52
    %v57 = vxor.u32 %v49, %v53
    %v58 = vxor.u32 %v50, %v54
    %v59 = vxor.u32 %v51, %v55
    %v60 = vmul.u32 %v56, 3266489909
    %v61 = vmul.u32 %v57, 3266489909
    %v62 = vmul.u32 %v58, 3266489909
    %v63 = vmul.u32 %v59, 3266489909
    %v64 = vshrl.u32 %v60, 16
    %v65 = vshrl.u32 %v61, 16
    %v66 = vshrl.u32 %v62, 16
    %v67 = vshrl.u32 %v63, 16
    %v68 = vxor.u32 %v60, %v64
    %v69 = vxor.u32 %v61, %v65
    %v70 = vxor.u32 %v62, %v66
    %v71 = vxor.u32 %v63, %v67
    %v72 = vshrl.u32 %v68, 9
    %v73 = vshrl.u32 %v69, 9
    %v74 = vshrl.u32 %v70, 9
    %v75 = vshrl.u32 %v71, 9
    %v76 = vor.u32 %v72, 1065353216
    %v77 = vor.u32 %v73, 1065353216
    %v78 = vor.u32 %v74, 1065353216
    %v79 = vor.u32 %v75, 1065353216
    %v84 = vsub.f32 %v76, 1.0
    %v85 = vsub.f32 %v77, 1.0
    %v86 = vsub.f32 %v78, 1.0
    %v87 = vsub.f32 %v79, 1.0
    %v88 = vxor.u32 %v32, 668265263
    %v89 = vxor.u32 %v33, 668265263
    %v90 = vxor.u32 %v34, 668265263
    %v91 = vxor.u32 %v35, 668265263
    %v92 = vshrl.u32 %v88, 16
    %v93 = vshrl.u32 %v89, 16
    %v94 = vshrl.u32 %v90, 16
    %v95 = vshrl.u32 %v91, 16
    %v96 = vxor.u32 %v88, %v92
    %v97 = vxor.u32 %v89, %v93
    %v98 = vxor.u32 %v90, %v94
    %v99 = vxor.u32 %v91, %v95
    %v100 = vmul.u32 %v96, 2246822507
    %v101 = vmul.u32 %v97, 2246822507
    %v102 = vmul.u32 %v98, 2246822507
    %v103 = vmul.u32 %v99, 2246822507
    %v104 = vshrl.u32 %v100, 13
    %v105 = vshrl.u32 %v101, 13
    %v106 = vshrl.u32 %v102, 13
    %v107 = vshrl.u32 %v103, 13
    %v108 = vxor.u32 %v100, %v104
    %v109 = vxor.u32 %v101, %v105
    %v110 = vxor.u32 %v102, %v106
    %v111 = vxor.u32 %v103, %v107
    %v112 = vmul.u32 %v108, 3266489909
    %v113 = vmul.u32 %v109, 3266489909
    %v114 = vmul.u32 %v110, 3266489909
    %v115 = vmul.u32 %v111, 3266489909
    %v116 = vshrl.u32 %v112, 16
    %v117 = vshrl.u32 %v113, 16
    %v118 = vshrl.u32 %v114, 16
    %v119 = vshrl.u32 %v115, 16
    %v120 = vxor.u32 %v112, %v116
    %v121 = vxor.u32 %v113, %v117
    %v122 = vxor.u32 %v114, %v118
    %v123 = vxor.u32 %v115, %v119
    %v124 = vshrl.u32 %v120, 9
    %v125 = vshrl.u32 %v121, 9
    %v126 = vshrl.u32 %v122, 9
    %v127 = vshrl.u32 %v123, 9
    %v128 = vor.u32 %v124, 1065353216
    %v129 = vor.u32 %v125, 1065353216
    %v130 = vor.u32 %v126, 1065353216
    %v131 = vor.u32 %v127, 1065353216
    %v136 = vsub.f32 %v128, 1.0
    %v137 = vsub.f32 %v129, 1.0
    %v138 = vsub.f32 %v130, 1.0
    %v139 = vsub.f32 %v131, 1.0
    %v140 = vsub.f32 1.0, %v84
    %v141 = vsub.f32 1.0, %v85
    %v142 = vsub.f32 1.0, %v86
    %v143 = vsub.f32 1.0, %v87
    %v144 = vlog2.pop %v140
    %v145 = vmul.f32 %v144, 0.6931472
    %v146 = vlog2.pop %v141
    %v147 = vmul.f32 %v146, 0.6931472
    %v148 = vlog2.pop %v142
    %v149 = vmul.f32 %v148, 0.6931472
    %v150 = vlog2.pop %v143
    %v151 = vmul.f32 %v150, 0.6931472
    %v152 = vmul.f32 %v145, -2.0
    %v153 = vmul.f32 %v147, -2.0
    %v154 = vmul.f32 %v149, -2.0
    %v155 = vmul.f32 %v151, -2.0
    %v156 = vrsqrt.pop %v152
    %v157 = vmul.f32 %v152, %v156
    %vm158 = vcmp.eq.f32.partialorder %v152, inf
    %v159 = vsel %vm158, %v152, %v157
    %vm160 = vcmp.eq.f32.partialorder %v152, 0.0
    %v161 = vand.u32 %v152, 2147483648
    %v162 = vsel %vm160, %v161, %v159
    %v163 = vrsqrt.pop %v153
    %v164 = vmul.f32 %v153, %v163
    %vm165 = vcmp.eq.f32.partialorder %v153, inf
    %v166 = vsel %vm165, %v153, %v164
    %vm167 = vcmp.eq.f32.partialorder %v153, 0.0
    %v168 = vand.u32 %v153, 2147483648
    %v169 = vsel %vm167, %v168, %v166
    %v170 = vrsqrt.pop %v154
    %v171 = vmul.f32 %v154, %v170
    %vm172 = vcmp.eq.f32.partialorder %v154, inf
    %v173 = vsel %vm172, %v154, %v171
    %vm174 = vcmp.eq.f32.partialorder %v154, 0.0
    %v175 = vand.u32 %v154, 2147483648
    %v176 = vsel %vm174, %v175, %v173
    %v177 = vrsqrt.pop %v155
    %v178 = vmul.f32 %v155, %v177
    %vm179 = vcmp.eq.f32.partialorder %v155, inf
    %v180 = vsel %vm179, %v155, %v178
    %vm181 = vcmp.eq.f32.partialorder %v155, 0.0
    %v182 = vand.u32 %v155, 2147483648
    %v183 = vsel %vm181, %v182, %v180
    %v184 = vmul.f32 %v136, 6.2831855
    %v185 = vmul.f32 %v137, 6.2831855
    %v186 = vmul.f32 %v138, 6.2831855
    %v187 = vmul.f32 %v139, 6.2831855
    %v188 = vand.u32 2147483647, %v184
    %vm189 = vcmp.le.f32.partialorder %v188, 0.7853982
    %vm190 = vcmp.lt.s32.totalorder %v184, 0
    %v191 = vand.u32 %v184, 2139095040
    %v192 = vshrl.u32 %v191, 23
    %v193 = vsub.s32 %v192, 127
    %v194 = vand.u32 2147483647, %v184
    %v195 = vand.u32 %v194, 8388607
    %v196 = vor.u32 %v195, 8388608
    %v197 = vsub.s32 0, %v196
    %v198 = vadd.s32 %v193, 1
    %vm199 = vcmp.gt.s32.totalorder %v198, 0
    %v200 = vsel %vm199, %v198, 0
    %v201 = vshrl.u32 %v200, 5
    %v202 = vand.u32 %v200, 31
    %v203 = vsub.s32 32, %v202
    %v204 = vshrl.u32 683565275, %v203
    %v205 = vshll.u32 683565275, %v202
    %v206 = vshrl.u32 2475754826, %v203
    %v207 = vor.u32 %v205, %v206
    %v208 = vshll.u32 2475754826, %v202
    %v209 = vshrl.u32 2131351028, %v203
    %v210 = vor.u32 %v208, %v209
    %v211 = vshll.u32 2131351028, %v202
    %v212 = vshrl.u32 2102212464, %v203
    %v213 = vor.u32 %v211, %v212
    %v214 = vshll.u32 2102212464, %v202
    %v215 = vshrl.u32 920167782, %v203
    %v216 = vor.u32 %v214, %v215
    %v217 = vshll.u32 920167782, %v202
    %v218 = vshrl.u32 1326507024, %v203
    %v219 = vor.u32 %v217, %v218
    %vm220 = vcmp.lt.s32.totalorder %v201, 1
    %vm221 = vcmp.lt.s32.totalorder %v201, 2
    %vm222 = vcmp.lt.s32.totalorder %v201, 3
    %vm223 = vcmp.lt.s32.totalorder %v201, 4
    %v224 = vsel %vm220, %v204, %v207
    %v225 = vsel %vm223, %v213, 2102212464
    %v226 = vsel %vm222, %v210, %v225
    %v227 = vsel %vm221, %v224, %v226
    %v228 = vsel %vm220, %v207, %v210
    %v229 = vsel %vm223, %v216, 920167782
    %v230 = vsel %vm222, %v213, %v229
    %v231 = vsel %vm221, %v228, %v230
    %v232 = vsel %vm220, %v210, %v213
    %v233 = vsel %vm223, %v219, 1326507024
    %v234 = vsel %vm222, %v216, %v233
    %v235 = vsel %vm221, %v232, %v234
    %v236 = vshll.u32 %v196, 8
    %v237 = vmul.u32.u64.compose %v236, %v235
    %v238 = vextract.low.u32 %v237
    %v239 = vextract.high.u32 %v237
    %v240 = vmul.u32.u64.compose %v236, %v231
    %v241 = vextract.low.u32 %v240
    %v242 = vextract.high.u32 %v240
    %v243 = vmul.u32 %v236, %v227
    %v244 = vadd.s32 %v239, %v241
    %vm245 = vc.u32 %v239, %v241
    %v246 = vadd.s32 %v242, 1
    %v247 = vsel %vm245, %v246, %v242
    %v248 = vadd.s32 %v243, %v247
    %v249 = vadd.s32 %v248, 536870912
    %v250 = vshrl.u32 %v249, 30
    %v251 = vshll.u32 %v250, 30
    %v252 = vsub.s32 %v248, %v251
    %vm253 = vcmp.lt.s32.totalorder %v252, 0
    %v254 = vsub.s32 0, %v252
    %v255 = vsel %vm253, %v254, %v252
    %v256 = vclz %v255
    %v257 = vsub.s32 %v256, 2
    %vm258 = vcmp.gt.s32.totalorder 0, %v257
    %v259 = vsel %vm258, 0, %v257
    %v260 = vsub.s32 32, %v259
    %v261 = vshll.u32 %v252, %v259
    %v262 = vshrl.u32 %v244, %v260
    %v263 = vor.u32 %v261, %v262
    %v264 = vsub.s32 4294967266, %v259
    %v265 = vadd.s32 %v264, 127
    %v266 = vshll.u32 %v265, 23
    %v267 = vor.u32 4788187, %v266
    %v268 = vand.u32 2147483647, %v267
    %v270 = vcvt.s32.f32 %v263
    %v271 = vmul.f32 %v270, %v268
    %v272 = vxor.u32 %v271, 2147483648
    %v273 = vsel %vm190, %v272, %v271
    %v274 = vsub.s32 4, %v250
    %v275 = vsel %vm190, %v274, %v250
    %v276 = vsel %vm189, %v184, %v273
    %v277 = vsel %vm189, 0, %v275
    %v278 = vcosq.f32.pop %v276
    %v279 = vsinq.f32.pop %v276
    %vm280 = vweird.f32 %v184
    %v281 = vand.u32 %v277, 3
    %vm282 = vcmp.lt.s32.totalorder %v281, 2
    %vm283 = vcmp.eq.s32.totalorder %v281, 0
    %v284 = vxor.u32 %v279, 2147483648
    %v285 = vsel %vm283, %v278, %v284
    %vm286 = vcmp.eq.s32.totalorder %v281, 2
    %v287 = vxor.u32 %v278, 2147483648
    %v288 = vsel %vm286, %v287, %v279
    %v289 = vsel %vm282, %v285, %v288
    %v290 = vsel %vm280, nan, %v289
    %v291 = vand.u32 2147483647, %v185
    %vm292 = vcmp.le.f32.partialorder %v291, 0.7853982
    %vm293 = vcmp.lt.s32.totalorder %v185, 0
    %v294 = vand.u32 %v185, 2139095040
    %v295 = vshrl.u32 %v294, 23
    %v296 = vsub.s32 %v295, 127
    %v297 = vand.u32 2147483647, %v185
    %v298 = vand.u32 %v297, 8388607
    %v299 = vor.u32 %v298, 8388608
    %v300 = vsub.s32 0, %v299
    %v301 = vadd.s32 %v296, 1
    %vm302 = vcmp.gt.s32.totalorder %v301, 0
    %v303 = vsel %vm302, %v301, 0
    %v304 = vshrl.u32 %v303, 5
    %v305 = vand.u32 %v303, 31
    %v306 = vsub.s32 32, %v305
    %v307 = vshrl.u32 683565275, %v306
    %v308 = vshll.u32 683565275, %v305
    %v309 = vshrl.u32 2475754826, %v306
    %v310 = vor.u32 %v308, %v309
    %v311 = vshll.u32 2475754826, %v305
    %v312 = vshrl.u32 2131351028, %v306
    %v313 = vor.u32 %v311, %v312
    %v314 = vshll.u32 2131351028, %v305
    %v315 = vshrl.u32 2102212464, %v306
    %v316 = vor.u32 %v314, %v315
    %v317 = vshll.u32 2102212464, %v305
    %v318 = vshrl.u32 920167782, %v306
    %v319 = vor.u32 %v317, %v318
    %v320 = vshll.u32 920167782, %v305
    %v321 = vshrl.u32 1326507024, %v306
    %v322 = vor.u32 %v320, %v321
    %vm323 = vcmp.lt.s32.totalorder %v304, 1
    %vm324 = vcmp.lt.s32.totalorder %v304, 2
    %vm325 = vcmp.lt.s32.totalorder %v304, 3
    %vm326 = vcmp.lt.s32.totalorder %v304, 4
    %v327 = vsel %vm323, %v307, %v310
    %v328 = vsel %vm326, %v316, 2102212464
    %v329 = vsel %vm325, %v313, %v328
    %v330 = vsel %vm324, %v327, %v329
    %v331 = vsel %vm323, %v310, %v313
    %v332 = vsel %vm326, %v319, 920167782
    %v333 = vsel %vm325, %v316, %v332
    %v334 = vsel %vm324, %v331, %v333
    %v335 = vsel %vm323, %v313, %v316
    %v336 = vsel %vm326, %v322, 1326507024
    %v337 = vsel %vm325, %v319, %v336
    %v338 = vsel %vm324, %v335, %v337
    %v339 = vshll.u32 %v299, 8
    %v340 = vmul.u32.u64.compose %v339, %v338
    %v341 = vextract.low.u32 %v340
    %v342 = vextract.high.u32 %v340
    %v343 = vmul.u32.u64.compose %v339, %v334
    %v344 = vextract.low.u32 %v343
    %v345 = vextract.high.u32 %v343
    %v346 = vmul.u32 %v339, %v330
    %v347 = vadd.s32 %v342, %v344
    %vm348 = vc.u32 %v342, %v344
    %v349 = vadd.s32 %v345, 1
    %v350 = vsel %vm348, %v349, %v345
    %v351 = vadd.s32 %v346, %v350
    %v352 = vadd.s32 %v351, 536870912
    %v353 = vshrl.u32 %v352, 30
    %v354 = vshll.u32 %v353, 30
    %v355 = vsub.s32 %v351, %v354
    %vm356 = vcmp.lt.s32.totalorder %v355, 0
    %v357 = vsub.s32 0, %v355
    %v358 = vsel %vm356, %v357, %v355
    %v359 = vclz %v358
    %v360 = vsub.s32 %v359, 2
    %vm361 = vcmp.gt.s32.totalorder 0, %v360
    %v362 = vsel %vm361, 0, %v360
    %v363 = vsub.s32 32, %v362
    %v364 = vshll.u32 %v355, %v362
    %v365 = vshrl.u32 %v347, %v363
    %v366 = vor.u32 %v364, %v365
    %v367 = vsub.s32 4294967266, %v362
    %v368 = vadd.s32 %v367, 127
    %v369 = vshll.u32 %v368, 23
    %v370 = vor.u32 4788187, %v369
    %v371 = vand.u32 2147483647, %v370
    %v373 = vcvt.s32.f32 %v366
    %v374 = vmul.f32 %v373, %v371
    %v375 = vxor.u32 %v374, 2147483648
    %v376 = vsel %vm293, %v375, %v374
    %v377 = vsub.s32 4, %v353
    %v378 = vsel %vm293, %v377, %v353
    %v379 = vsel %vm292, %v185, %v376
    %v380 = vsel %vm292, 0, %v378
    %v381 = vcosq.f32.pop %v379
    %v382 = vsinq.f32.pop %v379
    %vm383 = vweird.f32 %v185
    %v384 = vand.u32 %v380, 3
    %vm385 = vcmp.lt.s32.totalorder %v384, 2
    %vm386 = vcmp.eq.s32.totalorder %v384, 0
    %v387 = vxor.u32 %v382, 2147483648
    %v388 = vsel %vm386, %v381, %v387
    %vm389 = vcmp.eq.s32.totalorder %v384, 2
    %v390 = vxor.u32 %v381, 2147483648
    %v391 = vsel %vm389, %v390, %v382
    %v392 = vsel %vm385, %v388, %v391
    %v393 = vsel %vm383, nan, %v392
    %v394 = vand.u32 2147483647, %v186
    %vm395 = vcmp.le.f32.partialorder %v394, 0.7853982
    %vm396 = vcmp.lt.s32.totalorder %v186, 0
    %v397 = vand.u32 %v186, 2139095040
    %v398 = vshrl.u32 %v397, 23
    %v399 = vsub.s32 %v398, 127
    %v400 = vand.u32 2147483647, %v186
    %v401 = vand.u32 %v400, 8388607
    %v402 = vor.u32 %v401, 8388608
    %v403 = vsub.s32 0, %v402
    %v404 = vadd.s32 %v399, 1
    %vm405 = vcmp.gt.s32.totalorder %v404, 0
    %v406 = vsel %vm405, %v404, 0
    %v407 = vshrl.u32 %v406, 5
    %v408 = vand.u32 %v406, 31
    %v409 = vsub.s32 32, %v408
    %v410 = vshrl.u32 683565275, %v409
    %v411 = vshll.u32 683565275, %v408
    %v412 = vshrl.u32 2475754826, %v409
    %v413 = vor.u32 %v411, %v412
    %v414 = vshll.u32 2475754826, %v408
    %v415 = vshrl.u32 2131351028, %v409
    %v416 = vor.u32 %v414, %v415
    %v417 = vshll.u32 2131351028, %v408
    %v418 = vshrl.u32 2102212464, %v409
    %v419 = vor.u32 %v417, %v418
    %v420 = vshll.u32 2102212464, %v408
    %v421 = vshrl.u32 920167782, %v409
    %v422 = vor.u32 %v420, %v421
    %v423 = vshll.u32 920167782, %v408
    %v424 = vshrl.u32 1326507024, %v409
    %v425 = vor.u32 %v423, %v424
    %vm426 = vcmp.lt.s32.totalorder %v407, 1
    %vm427 = vcmp.lt.s32.totalorder %v407, 2
    %vm428 = vcmp.lt.s32.totalorder %v407, 3
    %vm429 = vcmp.lt.s32.totalorder %v407, 4
    %v430 = vsel %vm426, %v410, %v413
    %v431 = vsel %vm429, %v419, 2102212464
    %v432 = vsel %vm428, %v416, %v431
    %v433 = vsel %vm427, %v430, %v432
    %v434 = vsel %vm426, %v413, %v416
    %v435 = vsel %vm429, %v422, 920167782
    %v436 = vsel %vm428, %v419, %v435
    %v437 = vsel %vm427, %v434, %v436
    %v438 = vsel %vm426, %v416, %v419
    %v439 = vsel %vm429, %v425, 1326507024
    %v440 = vsel %vm428, %v422, %v439
    %v441 = vsel %vm427, %v438, %v440
    %v442 = vshll.u32 %v402, 8
    %v443 = vmul.u32.u64.compose %v442, %v441
    %v444 = vextract.low.u32 %v443
    %v445 = vextract.high.u32 %v443
    %v446 = vmul.u32.u64.compose %v442, %v437
    %v447 = vextract.low.u32 %v446
    %v448 = vextract.high.u32 %v446
    %v449 = vmul.u32 %v442, %v433
    %v450 = vadd.s32 %v445, %v447
    %vm451 = vc.u32 %v445, %v447
    %v452 = vadd.s32 %v448, 1
    %v453 = vsel %vm451, %v452, %v448
    %v454 = vadd.s32 %v449, %v453
    %v455 = vadd.s32 %v454, 536870912
    %v456 = vshrl.u32 %v455, 30
    %v457 = vshll.u32 %v456, 30
    %v458 = vsub.s32 %v454, %v457
    %vm459 = vcmp.lt.s32.totalorder %v458, 0
    %v460 = vsub.s32 0, %v458
    %v461 = vsel %vm459, %v460, %v458
    %v462 = vclz %v461
    %v463 = vsub.s32 %v462, 2
    %vm464 = vcmp.gt.s32.totalorder 0, %v463
    %v465 = vsel %vm464, 0, %v463
    %v466 = vsub.s32 32, %v465
    %v467 = vshll.u32 %v458, %v465
    %v468 = vshrl.u32 %v450, %v466
    %v469 = vor.u32 %v467, %v468
    %v470 = vsub.s32 4294967266, %v465
    %v471 = vadd.s32 %v470, 127
    %v472 = vshll.u32 %v471, 23
    %v473 = vor.u32 4788187, %v472
    %v474 = vand.u32 2147483647, %v473
    %v476 = vcvt.s32.f32 %v469
    %v477 = vmul.f32 %v476, %v474
    %v478 = vxor.u32 %v477, 2147483648
    %v479 = vsel %vm396, %v478, %v477
    %v480 = vsub.s32 4, %v456
    %v481 = vsel %vm396, %v480, %v456
    %v482 = vsel %vm395, %v186, %v479
    %v483 = vsel %vm395, 0, %v481
    %v484 = vcosq.f32.pop %v482
    %v485 = vsinq.f32.pop %v482
    %vm486 = vweird.f32 %v186
    %v487 = vand.u32 %v483, 3
    %vm488 = vcmp.lt.s32.totalorder %v487, 2
    %vm489 = vcmp.eq.s32.totalorder %v487, 0
    %v490 = vxor.u32 %v485, 2147483648
    %v491 = vsel %vm489, %v484, %v490
    %vm492 = vcmp.eq.s32.totalorder %v487, 2
    %v493 = vxor.u32 %v484, 2147483648
    %v494 = vsel %vm492, %v493, %v485
    %v495 = vsel %vm488, %v491, %v494
    %v496 = vsel %vm486, nan, %v495
    %v497 = vand.u32 2147483647, %v187
    %vm498 = vcmp.le.f32.partialorder %v497, 0.7853982
    %vm499 = vcmp.lt.s32.totalorder %v187, 0
    %v500 = vand.u32 %v187, 2139095040
    %v501 = vshrl.u32 %v500, 23
    %v502 = vsub.s32 %v501, 127
    %v503 = vand.u32 2147483647, %v187
    %v504 = vand.u32 %v503, 8388607
    %v505 = vor.u32 %v504, 8388608
    %v506 = vsub.s32 0, %v505
    %v507 = vadd.s32 %v502, 1
    %vm508 = vcmp.gt.s32.totalorder %v507, 0
    %v509 = vsel %vm508, %v507, 0
    %v510 = vshrl.u32 %v509, 5
    %v511 = vand.u32 %v509, 31
    %v512 = vsub.s32 32, %v511
    %v513 = vshrl.u32 683565275, %v512
    %v514 = vshll.u32 683565275, %v511
    %v515 = vshrl.u32 2475754826, %v512
    %v516 = vor.u32 %v514, %v515
    %v517 = vshll.u32 2475754826, %v511
    %v518 = vshrl.u32 2131351028, %v512
    %v519 = vor.u32 %v517, %v518
    %v520 = vshll.u32 2131351028, %v511
    %v521 = vshrl.u32 2102212464, %v512
    %v522 = vor.u32 %v520, %v521
    %v523 = vshll.u32 2102212464, %v511
    %v524 = vshrl.u32 920167782, %v512
    %v525 = vor.u32 %v523, %v524
    %v526 = vshll.u32 920167782, %v511
    %v527 = vshrl.u32 1326507024, %v512
    %v528 = vor.u32 %v526, %v527
    %vm529 = vcmp.lt.s32.totalorder %v510, 1
    %vm530 = vcmp.lt.s32.totalorder %v510, 2
    %vm531 = vcmp.lt.s32.totalorder %v510, 3
    %vm532 = vcmp.lt.s32.totalorder %v510, 4
    %v533 = vsel %vm529, %v513, %v516
    %v534 = vsel %vm532, %v522, 2102212464
    %v535 = vsel %vm531, %v519, %v534
    %v536 = vsel %vm530, %v533, %v535
    %v537 = vsel %vm529, %v516, %v519
    %v538 = vsel %vm532, %v525, 920167782
    %v539 = vsel %vm531, %v522, %v538
    %v540 = vsel %vm530, %v537, %v539
    %v541 = vsel %vm529, %v519, %v522
    %v542 = vsel %vm532, %v528, 1326507024
    %v543 = vsel %vm531, %v525, %v542
    %v544 = vsel %vm530, %v541, %v543
    %v545 = vshll.u32 %v505, 8
    %v546 = vmul.u32.u64.compose %v545, %v544
    %v547 = vextract.low.u32 %v546
    %v548 = vextract.high.u32 %v546
    %v549 = vmul.u32.u64.compose %v545, %v540
    %v550 = vextract.low.u32 %v549
    %v551 = vextract.high.u32 %v549
    %v552 = vmul.u32 %v545, %v536
    %v553 = vadd.s32 %v548, %v550
    %vm554 = vc.u32 %v548, %v550
    %v555 = vadd.s32 %v551, 1
    %v556 = vsel %vm554, %v555, %v551
    %v557 = vadd.s32 %v552, %v556
    %v558 = vadd.s32 %v557, 536870912
    %v559 = vshrl.u32 %v558, 30
    %v560 = vshll.u32 %v559, 30
    %v561 = vsub.s32 %v557, %v560
    %vm562 = vcmp.lt.s32.totalorder %v561, 0
    %v563 = vsub.s32 0, %v561
    %v564 = vsel %vm562, %v563, %v561
    %v565 = vclz %v564
    %v566 = vsub.s32 %v565, 2
    %vm567 = vcmp.gt.s32.totalorder 0, %v566
    %v568 = vsel %vm567, 0, %v566
    %v569 = vsub.s32 32, %v568
    %v570 = vshll.u32 %v561, %v568
    %v571 = vshrl.u32 %v553, %v569
    %v572 = vor.u32 %v570, %v571
    %v573 = vsub.s32 4294967266, %v568
    %v574 = vadd.s32 %v573, 127
    %v575 = vshll.u32 %v574, 23
    %v576 = vor.u32 4788187, %v575
    %v577 = vand.u32 2147483647, %v576
    %v579 = vcvt.s32.f32 %v572
    %v580 = vmul.f32 %v579, %v577
    %v581 = vxor.u32 %v580, 2147483648
    %v582 = vsel %vm499, %v581, %v580
    %v583 = vsub.s32 4, %v559
    %v584 = vsel %vm499, %v583, %v559
    %v585 = vsel %vm498, %v187, %v582
    %v586 = vsel %vm498, 0, %v584
    %v587 = vcosq.f32.pop %v585
    %v588 = vsinq.f32.pop %v585
    %vm589 = vweird.f32 %v187
    %v590 = vand.u32 %v586, 3
    %vm591 = vcmp.lt.s32.totalorder %v590, 2
    %vm592 = vcmp.eq.s32.totalorder %v590, 0
    %v593 = vxor.u32 %v588, 2147483648
    %v594 = vsel %vm592, %v587, %v593
    %vm595 = vcmp.eq.s32.totalorder %v590, 2
    %v596 = vxor.u32 %v587, 2147483648
    %v597 = vsel %vm595, %v596, %v588
    %v598 = vsel %vm591, %v594, %v597
    %v599 = vsel %vm589, nan, %v598
    %v600 = vmul.f32 %v162, %v290
    %v601 = vmul.f32 %v169, %v393
    %v602 = vmul.f32 %v176, %v496
    %v603 = vmul.f32 %v183, %v599
    %v604 = vand.u32 2147483647, %v184
    %vm605 = vcmp.le.f32.partialorder %v604, 0.7853982
    %vm606 = vcmp.lt.s32.totalorder %v184, 0
    %v607 = vand.u32 %v184, 2139095040
    %v608 = vshrl.u32 %v607, 23
    %v609 = vsub.s32 %v608, 127
    %v610 = vand.u32 2147483647, %v184
    %v611 = vand.u32 %v610, 8388607
    %v612 = vor.u32 %v611, 8388608
    %v613 = vsub.s32 0, %v612
    %v614 = vadd.s32 %v609, 1
    %vm615 = vcmp.gt.s32.totalorder %v614, 0
    %v616 = vsel %vm615, %v614, 0
    %v617 = vshrl.u32 %v616, 5
    %v618 = vand.u32 %v616, 31
    %v619 = vsub.s32 32, %v618
    %v620 = vshrl.u32 683565275, %v619
    %v621 = vshll.u32 683565275, %v618
    %v622 = vshrl.u32 2475754826, %v619
    %v623 = vor.u32 %v621, %v622
    %v624 = vshll.u32 2475754826, %v618
    %v625 = vshrl.u32 2131351028, %v619
    %v626 = vor.u32 %v624, %v625
    %v627 = vshll.u32 2131351028, %v618
    %v628 = vshrl.u32 2102212464, %v619
    %v629 = vor.u32 %v627, %v628
    %v630 = vshll.u32 2102212464, %v618
    %v631 = vshrl.u32 920167782, %v619
    %v632 = vor.u32 %v630, %v631
    %v633 = vshll.u32 920167782, %v618
    %v634 = vshrl.u32 1326507024, %v619
    %v635 = vor.u32 %v633, %v634
    %vm636 = vcmp.lt.s32.totalorder %v617, 1
    %vm637 = vcmp.lt.s32.totalorder %v617, 2
    %vm638 = vcmp.lt.s32.totalorder %v617, 3
    %vm639 = vcmp.lt.s32.totalorder %v617, 4
    %v640 = vsel %vm636, %v620, %v623
    %v641 = vsel %vm639, %v629, 2102212464
    %v642 = vsel %vm638, %v626, %v641
    %v643 = vsel %vm637, %v640, %v642
    %v644 = vsel %vm636, %v623, %v626
    %v645 = vsel %vm639, %v632, 920167782
    %v646 = vsel %vm638, %v629, %v645
    %v647 = vsel %vm637, %v644, %v646
    %v648 = vsel %vm636, %v626, %v629
    %v649 = vsel %vm639, %v635, 1326507024
    %v650 = vsel %vm638, %v632, %v649
    %v651 = vsel %vm637, %v648, %v650
    %v652 = vshll.u32 %v612, 8
    %v653 = vmul.u32.u64.compose %v652, %v651
    %v654 = vextract.low.u32 %v653
    %v655 = vextract.high.u32 %v653
    %v656 = vmul.u32.u64.compose %v652, %v647
    %v657 = vextract.low.u32 %v656
    %v658 = vextract.high.u32 %v656
    %v659 = vmul.u32 %v652, %v643
    %v660 = vadd.s32 %v655, %v657
    %vm661 = vc.u32 %v655, %v657
    %v662 = vadd.s32 %v658, 1
    %v663 = vsel %vm661, %v662, %v658
    %v664 = vadd.s32 %v659, %v663
    %v665 = vadd.s32 %v664, 536870912
    %v666 = vshrl.u32 %v665, 30
    %v667 = vshll.u32 %v666, 30
    %v668 = vsub.s32 %v664, %v667
    %vm669 = vcmp.lt.s32.totalorder %v668, 0
    %v670 = vsub.s32 0, %v668
    %v671 = vsel %vm669, %v670, %v668
    %v672 = vclz %v671
    %v673 = vsub.s32 %v672, 2
    %vm674 = vcmp.gt.s32.totalorder 0, %v673
    %v675 = vsel %vm674, 0, %v673
    %v676 = vsub.s32 32, %v675
    %v677 = vshll.u32 %v668, %v675
    %v678 = vshrl.u32 %v660, %v676
    %v679 = vor.u32 %v677, %v678
    %v680 = vsub.s32 4294967266, %v675
    %v681 = vadd.s32 %v680, 127
    %v682 = vshll.u32 %v681, 23
    %v683 = vor.u32 4788187, %v682
    %v684 = vand.u32 2147483647, %v683
    %v686 = vcvt.s32.f32 %v679
    %v687 = vmul.f32 %v686, %v684
    %v688 = vxor.u32 %v687, 2147483648
    %v689 = vsel %vm606, %v688, %v687
    %v690 = vsub.s32 4, %v666
    %v691 = vsel %vm606, %v690, %v666
    %v692 = vsel %vm605, %v184, %v689
    %v693 = vsel %vm605, 0, %v691
    %v694 = vcosq.f32.pop %v692
    %v695 = vsinq.f32.pop %v692
    %vm696 = vweird.f32 %v184
    %v697 = vadd.s32 %v693, 3
    %v698 = vand.u32 %v697, 3
    %vm699 = vcmp.lt.s32.totalorder %v698, 2
    %vm700 = vcmp.eq.s32.totalorder %v698, 0
    %v701 = vxor.u32 %v695, 2147483648
    %v702 = vsel %vm700, %v694, %v701
    %vm703 = vcmp.eq.s32.totalorder %v698, 2
    %v704 = vxor.u32 %v694, 2147483648
    %v705 = vsel %vm703, %v704, %v695
    %v706 = vsel %vm699, %v702, %v705
    %v707 = vsel %vm696, nan, %v706
    %v708 = vand.u32 2147483647, %v185
    %vm709 = vcmp.le.f32.partialorder %v708, 0.7853982
    %vm710 = vcmp.lt.s32.totalorder %v185, 0
    %v711 = vand.u32 %v185, 2139095040
    %v712 = vshrl.u32 %v711, 23
    %v713 = vsub.s32 %v712, 127
    %v714 = vand.u32 2147483647, %v185
    %v715 = vand.u32 %v714, 8388607
    %v716 = vor.u32 %v715, 8388608
    %v717 = vsub.s32 0, %v716
    %v718 = vadd.s32 %v713, 1
    %vm719 = vcmp.gt.s32.totalorder %v718, 0
    %v720 = vsel %vm719, %v718, 0
    %v721 = vshrl.u32 %v720, 5
    %v722 = vand.u32 %v720, 31
    %v723 = vsub.s32 32, %v722
    %v724 = vshrl.u32 683565275, %v723
    %v725 = vshll.u32 683565275, %v722
    %v726 = vshrl.u32 2475754826, %v723
    %v727 = vor.u32 %v725, %v726
    %v728 = vshll.u32 2475754826, %v722
    %v729 = vshrl.u32 2131351028, %v723
    %v730 = vor.u32 %v728, %v729
    %v731 = vshll.u32 2131351028, %v722
    %v732 = vshrl.u32 2102212464, %v723
    %v733 = vor.u32 %v731, %v732
    %v734 = vshll.u32 2102212464, %v722
    %v735 = vshrl.u32 920167782, %v723
    %v736 = vor.u32 %v734, %v735
    %v737 = vshll.u32 920167782, %v722
    %v738 = vshrl.u32 1326507024, %v723
    %v739 = vor.u32 %v737, %v738
    %vm740 = vcmp.lt.s32.totalorder %v721, 1
    %vm741 = vcmp.lt.s32.totalorder %v721, 2
    %vm742 = vcmp.lt.s32.totalorder %v721, 3
    %vm743 = vcmp.lt.s32.totalorder %v721, 4
    %v744 = vsel %vm740, %v724, %v727
    %v745 = vsel %vm743, %v733, 2102212464
    %v746 = vsel %vm742, %v730, %v745
    %v747 = vsel %vm741, %v744, %v746
    %v748 = vsel %vm740, %v727, %v730
    %v749 = vsel %vm743, %v736, 920167782
    %v750 = vsel %vm742, %v733, %v749
    %v751 = vsel %vm741, %v748, %v750
    %v752 = vsel %vm740, %v730, %v733
    %v753 = vsel %vm743, %v739, 1326507024
    %v754 = vsel %vm742, %v736, %v753
    %v755 = vsel %vm741, %v752, %v754
    %v756 = vshll.u32 %v716, 8
    %v757 = vmul.u32.u64.compose %v756, %v755
    %v758 = vextract.low.u32 %v757
    %v759 = vextract.high.u32 %v757
    %v760 = vmul.u32.u64.compose %v756, %v751
    %v761 = vextract.low.u32 %v760
    %v762 = vextract.high.u32 %v760
    %v763 = vmul.u32 %v756, %v747
    %v764 = vadd.s32 %v759, %v761
    %vm765 = vc.u32 %v759, %v761
    %v766 = vadd.s32 %v762, 1
    %v767 = vsel %vm765, %v766, %v762
    %v768 = vadd.s32 %v763, %v767
    %v769 = vadd.s32 %v768, 536870912
    %v770 = vshrl.u32 %v769, 30
    %v771 = vshll.u32 %v770, 30
    %v772 = vsub.s32 %v768, %v771
    %vm773 = vcmp.lt.s32.totalorder %v772, 0
    %v774 = vsub.s32 0, %v772
    %v775 = vsel %vm773, %v774, %v772
    %v776 = vclz %v775
    %v777 = vsub.s32 %v776, 2
    %vm778 = vcmp.gt.s32.totalorder 0, %v777
    %v779 = vsel %vm778, 0, %v777
    %v780 = vsub.s32 32, %v779
    %v781 = vshll.u32 %v772, %v779
    %v782 = vshrl.u32 %v764, %v780
    %v783 = vor.u32 %v781, %v782
    %v784 = vsub.s32 4294967266, %v779
    %v785 = vadd.s32 %v784, 127
    %v786 = vshll.u32 %v785, 23
    %v787 = vor.u32 4788187, %v786
    %v788 = vand.u32 2147483647, %v787
    %v790 = vcvt.s32.f32 %v783
    %v791 = vmul.f32 %v790, %v788
    %v792 = vxor.u32 %v791, 2147483648
    %v793 = vsel %vm710, %v792, %v791
    %v794 = vsub.s32 4, %v770
    %v795 = vsel %vm710, %v794, %v770
    %v796 = vsel %vm709, %v185, %v793
    %v797 = vsel %vm709, 0, %v795
    %v798 = vcosq.f32.pop %v796
    %v799 = vsinq.f32.pop %v796
    %vm800 = vweird.f32 %v185
    %v801 = vadd.s32 %v797, 3
    %v802 = vand.u32 %v801, 3
    %vm803 = vcmp.lt.s32.totalorder %v802, 2
    %vm804 = vcmp.eq.s32.totalorder %v802, 0
    %v805 = vxor.u32 %v799, 2147483648
    %v806 = vsel %vm804, %v798, %v805
    %vm807 = vcmp.eq.s32.totalorder %v802, 2
    %v808 = vxor.u32 %v798, 2147483648
    %v809 = vsel %vm807, %v808, %v799
    %v810 = vsel %vm803, %v806, %v809
    %v811 = vsel %vm800, nan, %v810
    %v812 = vand.u32 2147483647, %v186
    %vm813 = vcmp.le.f32.partialorder %v812, 0.7853982
    %vm814 = vcmp.lt.s32.totalorder %v186, 0
    %v815 = vand.u32 %v186, 2139095040
    %v816 = vshrl.u32 %v815, 23
    %v817 = vsub.s32 %v816, 127
    %v818 = vand.u32 2147483647, %v186
    %v819 = vand.u32 %v818, 8388607
    %v820 = vor.u32 %v819, 8388608
    %v821 = vsub.s32 0, %v820
    %v822 = vadd.s32 %v817, 1
    %vm823 = vcmp.gt.s32.totalorder %v822, 0
    %v824 = vsel %vm823, %v822, 0
    %v825 = vshrl.u32 %v824, 5
    %v826 = vand.u32 %v824, 31
    %v827 = vsub.s32 32, %v826
    %v828 = vshrl.u32 683565275, %v827
    %v829 = vshll.u32 683565275, %v826
    %v830 = vshrl.u32 2475754826, %v827
    %v831 = vor.u32 %v829, %v830
    %v832 = vshll.u32 2475754826, %v826
    %v833 = vshrl.u32 2131351028, %v827
    %v834 = vor.u32 %v832, %v833
    %v835 = vshll.u32 2131351028, %v826
    %v836 = vshrl.u32 2102212464, %v827
    %v837 = vor.u32 %v835, %v836
    %v838 = vshll.u32 2102212464, %v826
    %v839 = vshrl.u32 920167782, %v827
    %v840 = vor.u32 %v838, %v839
    %v841 = vshll.u32 920167782, %v826
    %v842 = vshrl.u32 1326507024, %v827
    %v843 = vor.u32 %v841, %v842
    %vm844 = vcmp.lt.s32.totalorder %v825, 1
    %vm845 = vcmp.lt.s32.totalorder %v825, 2
    %vm846 = vcmp.lt.s32.totalorder %v825, 3
    %vm847 = vcmp.lt.s32.totalorder %v825, 4
    %v848 = vsel %vm844, %v828, %v831
    %v849 = vsel %vm847, %v837, 2102212464
    %v850 = vsel %vm846, %v834, %v849
    %v851 = vsel %vm845, %v848, %v850
    %v852 = vsel %vm844, %v831, %v834
    %v853 = vsel %vm847, %v840, 920167782
    %v854 = vsel %vm846, %v837, %v853
    %v855 = vsel %vm845, %v852, %v854
    %v856 = vsel %vm844, %v834, %v837
    %v857 = vsel %vm847, %v843, 1326507024
    %v858 = vsel %vm846, %v840, %v857
    %v859 = vsel %vm845, %v856, %v858
    %v860 = vshll.u32 %v820, 8
    %v861 = vmul.u32.u64.compose %v860, %v859
    %v862 = vextract.low.u32 %v861
    %v863 = vextract.high.u32 %v861
    %v864 = vmul.u32.u64.compose %v860, %v855
    %v865 = vextract.low.u32 %v864
    %v866 = vextract.high.u32 %v864
    %v867 = vmul.u32 %v860, %v851
    %v868 = vadd.s32 %v863, %v865
    %vm869 = vc.u32 %v863, %v865
    %v870 = vadd.s32 %v866, 1
    %v871 = vsel %vm869, %v870, %v866
    %v872 = vadd.s32 %v867, %v871
    %v873 = vadd.s32 %v872, 536870912
    %v874 = vshrl.u32 %v873, 30
    %v875 = vshll.u32 %v874, 30
    %v876 = vsub.s32 %v872, %v875
    %vm877 = vcmp.lt.s32.totalorder %v876, 0
    %v878 = vsub.s32 0, %v876
    %v879 = vsel %vm877, %v878, %v876
    %v880 = vclz %v879
    %v881 = vsub.s32 %v880, 2
    %vm882 = vcmp.gt.s32.totalorder 0, %v881
    %v883 = vsel %vm882, 0, %v881
    %v884 = vsub.s32 32, %v883
    %v885 = vshll.u32 %v876, %v883
    %v886 = vshrl.u32 %v868, %v884
    %v887 = vor.u32 %v885, %v886
    %v888 = vsub.s32 4294967266, %v883
    %v889 = vadd.s32 %v888, 127
    %v890 = vshll.u32 %v889, 23
    %v891 = vor.u32 4788187, %v890
    %v892 = vand.u32 2147483647, %v891
    %v894 = vcvt.s32.f32 %v887
    %v895 = vmul.f32 %v894, %v892
    %v896 = vxor.u32 %v895, 2147483648
    %v897 = vsel %vm814, %v896, %v895
    %v898 = vsub.s32 4, %v874
    %v899 = vsel %vm814, %v898, %v874
    %v900 = vsel %vm813, %v186, %v897
    %v901 = vsel %vm813, 0, %v899
    %v902 = vcosq.f32.pop %v900
    %v903 = vsinq.f32.pop %v900
    %vm904 = vweird.f32 %v186
    %v905 = vadd.s32 %v901, 3
    %v906 = vand.u32 %v905, 3
    %vm907 = vcmp.lt.s32.totalorder %v906, 2
    %vm908 = vcmp.eq.s32.totalorder %v906, 0
    %v909 = vxor.u32 %v903, 2147483648
    %v910 = vsel %vm908, %v902, %v909
    %vm911 = vcmp.eq.s32.totalorder %v906, 2
    %v912 = vxor.u32 %v902, 2147483648
    %v913 = vsel %vm911, %v912, %v903
    %v914 = vsel %vm907, %v910, %v913
    %v915 = vsel %vm904, nan, %v914
    %v916 = vand.u32 2147483647, %v187
    %vm917 = vcmp.le.f32.partialorder %v916, 0.7853982
    %vm918 = vcmp.lt.s32.totalorder %v187, 0
    %v919 = vand.u32 %v187, 2139095040
    %v920 = vshrl.u32 %v919, 23
    %v921 = vsub.s32 %v920, 127
    %v922 = vand.u32 2147483647, %v187
    %v923 = vand.u32 %v922, 8388607
    %v924 = vor.u32 %v923, 8388608
    %v925 = vsub.s32 0, %v924
    %v926 = vadd.s32 %v921, 1
    %vm927 = vcmp.gt.s32.totalorder %v926, 0
    %v928 = vsel %vm927, %v926, 0
    %v929 = vshrl.u32 %v928, 5
    %v930 = vand.u32 %v928, 31
    %v931 = vsub.s32 32, %v930
    %v932 = vshrl.u32 683565275, %v931
    %v933 = vshll.u32 683565275, %v930
    %v934 = vshrl.u32 2475754826, %v931
    %v935 = vor.u32 %v933, %v934
    %v936 = vshll.u32 2475754826, %v930
    %v937 = vshrl.u32 2131351028, %v931
    %v938 = vor.u32 %v936, %v937
    %v939 = vshll.u32 2131351028, %v930
    %v940 = vshrl.u32 2102212464, %v931
    %v941 = vor.u32 %v939, %v940
    %v942 = vshll.u32 2102212464, %v930
    %v943 = vshrl.u32 920167782, %v931
    %v944 = vor.u32 %v942, %v943
    %v945 = vshll.u32 920167782, %v930
    %v946 = vshrl.u32 1326507024, %v931
    %v947 = vor.u32 %v945, %v946
    %vm948 = vcmp.lt.s32.totalorder %v929, 1
    %vm949 = vcmp.lt.s32.totalorder %v929, 2
    %vm950 = vcmp.lt.s32.totalorder %v929, 3
    %vm951 = vcmp.lt.s32.totalorder %v929, 4
    %v952 = vsel %vm948, %v932, %v935
    %v953 = vsel %vm951, %v941, 2102212464
    %v954 = vsel %vm950, %v938, %v953
    %v955 = vsel %vm949, %v952, %v954
    %v956 = vsel %vm948, %v935, %v938
    %v957 = vsel %vm951, %v944, 920167782
    %v958 = vsel %vm950, %v941, %v957
    %v959 = vsel %vm949, %v956, %v958
    %v960 = vsel %vm948, %v938, %v941
    %v961 = vsel %vm951, %v947, 1326507024
    %v962 = vsel %vm950, %v944, %v961
    %v963 = vsel %vm949, %v960, %v962
    %v964 = vshll.u32 %v924, 8
    %v965 = vmul.u32.u64.compose %v964, %v963
    %v966 = vextract.low.u32 %v965
    %v967 = vextract.high.u32 %v965
    %v968 = vmul.u32.u64.compose %v964, %v959
    %v969 = vextract.low.u32 %v968
    %v970 = vextract.high.u32 %v968
    %v971 = vmul.u32 %v964, %v955
    %v972 = vadd.s32 %v967, %v969
    %vm973 = vc.u32 %v967, %v969
    %v974 = vadd.s32 %v970, 1
    %v975 = vsel %vm973, %v974, %v970
    %v976 = vadd.s32 %v971, %v975
    %v977 = vadd.s32 %v976, 536870912
    %v978 = vshrl.u32 %v977, 30
    %v979 = vshll.u32 %v978, 30
    %v980 = vsub.s32 %v976, %v979
    %vm981 = vcmp.lt.s32.totalorder %v980, 0
    %v982 = vsub.s32 0, %v980
    %v983 = vsel %vm981, %v982, %v980
    %v984 = vclz %v983
    %v985 = vsub.s32 %v984, 2
    %vm986 = vcmp.gt.s32.totalorder 0, %v985
    %v987 = vsel %vm986, 0, %v985
    %v988 = vsub.s32 32, %v987
    %v989 = vshll.u32 %v980, %v987
    %v990 = vshrl.u32 %v972, %v988
    %v991 = vor.u32 %v989, %v990
    %v992 = vsub.s32 4294967266, %v987
    %v993 = vadd.s32 %v992, 127
    %v994 = vshll.u32 %v993, 23
    %v995 = vor.u32 4788187, %v994
    %v996 = vand.u32 2147483647, %v995
    %v998 = vcvt.s32.f32 %v991
    %v999 = vmul.f32 %v998, %v996
    %v1000 = vxor.u32 %v999, 2147483648
    %v1001 = vsel %vm918, %v1000, %v999
    %v1002 = vsub.s32 4, %v978
    %v1003 = vsel %vm918, %v1002, %v978
    %v1004 = vsel %vm917, %v187, %v1001
    %v1005 = vsel %vm917, 0, %v1003
    %v1006 = vcosq.f32.pop %v1004
    %v1007 = vsinq.f32.pop %v1004
    %vm1008 = vweird.f32 %v187
    %v1009 = vadd.s32 %v1005, 3
    %v1010 = vand.u32 %v1009, 3
    %vm1011 = vcmp.lt.s32.totalorder %v1010, 2
    %vm1012 = vcmp.eq.s32.totalorder %v1010, 0
    %v1013 = vxor.u32 %v1007, 2147483648
    %v1014 = vsel %vm1012, %v1006, %v1013
    %vm1015 = vcmp.eq.s32.totalorder %v1010, 2
    %v1016 = vxor.u32 %v1006, 2147483648
    %v1017 = vsel %vm1015, %v1016, %v1007
    %v1018 = vsel %vm1011, %v1014, %v1017
    %v1019 = vsel %vm1008, nan, %v1018
    %v1020 = vmul.f32 %v162, %v707
    %v1021 = vmul.f32 %v169, %v811
    %v1022 = vmul.f32 %v176, %v915
    %v1023 = vmul.f32 %v183, %v1019
    %v1028 = vrot.slane %v1020, 4
    %v1029 = vrot.slane %v1021, 4
    %v1030 = vrot.slane %v1022, 4
    %v1031 = vrot.slane %v1023, 4
    %vm1036 = vcmask 1043456
    %v1037 = vsel %vm1036, %v600, %v1028
    %v1038 = vsel %vm1036, %v601, %v1029
    %v1039 = vsel %vm1036, %v602, %v1030
    %v1040 = vsel %vm1036, %v603, %v1031
    %v1041 = vld [vmem:[#allocation2] sm:$0xff]
    %v1042 = vld [vmem:[#allocation2 + $0x8] sm:$0xff]
    %v1043 = vld [vmem:[#allocation2 + $0x10] sm:$0xff]
    %v1044 = vld [vmem:[#allocation2 + $0x18] sm:$0xff]
    %v1045 = vmul.f32 %v1037, 0.1
    %v1046 = vmul.f32 %v1038, 0.1
    %v1047 = vmul.f32 %v1039, 0.1
    %v1048 = vmul.f32 %v1040, 0.1
    %v1049 = vadd.f32 %v1041, %v1045
    %v1050 = vadd.f32 %v1042, %v1046
    %v1051 = vadd.f32 %v1043, %v1047
    %v1052 = vadd.f32 %v1044, %v1048
    %1053 = vst [vmem:[#allocation5] sm:$0xff] %v1049
    %1054 = vst [vmem:[#allocation5 + $0x8] sm:$0xff] %v1050
    %1055 = vst [vmem:[#allocation5 + $0x10] sm:$0xff] %v1051
    %1056 = vst [vmem:[#allocation5 + $0x18] sm:$0xff] %v1052
    // Predicated region
    $region10: #{tpu_custom_call.1} parent=1 // pred_check
      _
    $region11: #{tpu_custom_call.1} parent=1 // pred_check_branch
      %1058 = sbr.rel (0) target = $region13
    $region12: #{tpu_custom_call.1} parent=1 // pred_region
      %s1060 = ssub.s32 512, 512
      %1061 = vsyncadd [#allocation4], %s1060
      %s1063 = sshll.u32 [#allocation5], 4
      %s1064 = int_to_ptr.vmem [resolvable:$true] %s1063
      %1066 = dma.vmem_to_hbm [thread:$0]  %s1064, 512, %s1, [#allocation4]
    $region13: #{tpu_custom_call.1} parent=1 // pred_fallthru
      _
    // Predicated region
    $region14: #{tpu_custom_call.1} parent=1 // pred_check
      _
    $region15: #{tpu_custom_call.1} parent=1 // pred_check_branch
      %1068 = sbr.rel (0) target = $region17
    $region16: #{tpu_custom_call.1} parent=1 // pred_region
      %1069 = dma.done [#allocation4], 512
    $region17: #{tpu_custom_call.1} parent=1 // pred_fallthru
      _
    %1070 = vsyncpa [#allocation3], 1
    %1071 = vsyncpa [#allocation4], 1

</llo_original>
